<compile_context>
chip_gen: v5e
topology: v5e:2x2
jax: 0.10.0
libtpu: 0.0.40
codegen_flags: <defaults>
</compile_context>

<pallas_src>
import functools

import jax
import jax.numpy as jnp
from jax.experimental import pallas as pl
from jax.experimental.pallas import tpu as pltpu


def _aspect_out_kernel(seed_ref, x_ref, w_ref, b_ref, o_ref, *, keep_prob, training):
    """y = dropout(x) @ W^T + b for one (TM, H) row tile."""
    x = x_ref[...]                      # native dtype, straight to the MXU
    tm, h = x_ref.shape                 # static block shape

    apply_mask = training and keep_prob < 1.0
    if apply_mask:
        # Deterministic per-element uniform bits: hash(global_element_index, seed).
        # Tile index is folded into the global row index so every row tile gets an
        # independent mask (no correlated dropout across grid steps).
        seed_u = seed_ref[0].astype(jnp.uint32)
        tile_u = pl.program_id(0).astype(jnp.uint32)
        row = jax.lax.broadcasted_iota(jnp.int32, (tm, h), 0).astype(jnp.uint32)
        col = jax.lax.broadcasted_iota(jnp.int32, (tm, h), 1).astype(jnp.uint32)
        gidx = (tile_u * jnp.uint32(tm) + row) * jnp.uint32(h) + col

        z = gidx ^ (seed_u * jnp.uint32(0x9E3779B9))
        z = z ^ (z >> 16)
        z = z * jnp.uint32(0x85EBCA6B)
        z = z ^ (z >> 13)
        z = z * jnp.uint32(0xC2B2AE35)
        z = z ^ (z >> 16)

        # Integer compare (no float convert / multiply on the M*H path).
        thresh = jnp.uint32(min(int(keep_prob * 4294967296.0), 4294967295))
        keep = z < thresh
        x = jnp.where(keep, x, jnp.zeros_like(x))

    # (TM, H) x (O, H) contracting H -> (TM, O), f32 accumulation on the MXU.
    y = jax.lax.dot_general(
        x, w_ref[...],
        dimension_numbers=(((1,), (1,)), ((), ())),
        preferred_element_type=jnp.float32)

    if apply_mask and keep_prob > 0.0:
        # Inverted-dropout scale, commuted through the matmul: applied to the
        # (TM, O) result instead of every (TM, H) input element.
        y = y * jnp.float32(1.0 / keep_prob)

    o_ref[...] = (y + b_ref[...].astype(jnp.float32)).astype(o_ref.dtype)


def aspect_out(x, weight, bias, seed, *, dropout=0.3, training=False):
    """Pallas implementation of AspectOut.forward.

    x:      (..., H) activations
    weight: (O, H)   -- torch.nn.Linear.weight layout
    bias:   (O,)     -- torch.nn.Linear.bias
    seed:   int seed for the dropout mask (ignored when training=False)
    """
    orig_shape = x.shape
    H = orig_shape[-1]
    O = weight.shape[0]
    x2 = x.reshape(-1, H)
    M = x2.shape[0]

    # Row-tile size: big tiles amortize the ~0.35 us/grid-step overhead while the
    # double-buffered (TM, H) tile stays a small fraction of (v7x-sized) VMEM.
    if M <= 1024:
        tm = M                                   # full dim -> no (8,) constraint
    else:
        itemsize = jnp.dtype(x2.dtype).itemsize
        rows = (4 * 1024 * 1024) // max(1, H * itemsize)   # ~4 MiB x-tile budget
        tm = int(max(8, min(1024, rows))) // 8 * 8          # multiple of 8
    grid = (pl.cdiv(M, tm),)

    b2 = bias.reshape(1, O)
    seed_arr = jnp.asarray([seed], dtype=jnp.int32)

    kernel = functools.partial(
        _aspect_out_kernel,
        keep_prob=1.0 - float(dropout),
        training=bool(training),
    )

    out = pl.pallas_call(
        kernel,
        out_shape=jax.ShapeDtypeStruct((M, O), x.dtype),
        grid=grid,
        in_specs=[
            pl.BlockSpec(memory_space=pltpu.MemorySpace.SMEM),   # seed scalar
            pl.BlockSpec((tm, H), lambda i: (i, 0)),             # x row tile
            pl.BlockSpec((O, H), lambda i: (0, 0)),              # weight (resident)
            pl.BlockSpec((1, O), lambda i: (0, 0)),              # bias   (resident)
        ],
        out_specs=pl.BlockSpec((tm, O), lambda i: (i, 0)),
        compiler_params=pltpu.CompilerParams(
            dimension_semantics=("parallel",)),                  # megacore on v7x
    )(seed_arr, x2, weight, b2)

    return out.reshape(orig_shape[:-1] + (O,))


if __name__ == "__main__":
    # Small shapes implied by the module: hidden_size=32, out_aspect=4,
    # activations (batch=2, seq=8, hidden=32).
    key = jax.random.PRNGKey(0)
    k_x, k_w, k_b = jax.random.split(key, 3)

    batch, seq, hidden, out_aspect = 2, 8, 32, 4
    x = jax.random.normal(k_x, (batch, seq, hidden), dtype=jnp.float32)
    bound = 1.0 / (hidden ** 0.5)
    weight = jax.random.uniform(k_w, (out_aspect, hidden), jnp.float32, -bound, bound)
    bias = jax.random.uniform(k_b, (out_aspect,), jnp.float32, -bound, bound)

    # Eval mode (dropout = identity): exact match against a pure-JAX reference.
    y = aspect_out(x, weight, bias, seed=0, dropout=0.3, training=False)
    y = jax.block_until_ready(y)
    y_ref = x @ weight.T + bias
    assert y.shape == (batch, seq, out_aspect)
    assert jnp.allclose(y, y_ref, atol=1e-5, rtol=1e-5), "eval mismatch vs reference"

    # Training mode with p=0: dropout path is a structural no-op -> exact match.
    y_p0 = aspect_out(x, weight, bias, seed=7, dropout=0.0, training=True)
    y_p0 = jax.block_until_ready(y_p0)
    assert jnp.allclose(y_p0, y_ref, atol=1e-5, rtol=1e-5), "p=0 training mismatch"

    # Training mode with p=0.3: exercises the in-kernel mask (stochastic by
    # definition; deterministic per seed, no exact torch RNG match).
    y_train = aspect_out(x, weight, bias, seed=1234, dropout=0.3, training=True)
    y_train = jax.block_until_ready(y_train)
    assert y_train.shape == (batch, seq, out_aspect)
    assert bool(jnp.all(jnp.isfinite(y_train)))

    print("KERNEL_OK")
</pallas_src>

<mosaic_0001>
module attributes {stable_mosaic.version = 11 : i64} {
  func.func @_aspect_out_kernel(%arg0: i32, %arg1: memref<1xi32, #tpu.memory_space<smem>>, %arg2: memref<16x32xf32, #tpu.memory_space<vmem>>, %arg3: memref<4x32xf32, #tpu.memory_space<vmem>>, %arg4: memref<1x4xf32, #tpu.memory_space<vmem>>, %arg5: memref<16x4xf32, #tpu.memory_space<vmem>>) attributes {dimension_semantics = [#tpu.dimension_semantics<parallel>], iteration_bounds = array<i64: 1>, scalar_prefetch = 0 : i64, scratch_operands = 0 : i64, tpu.core_type = #tpu.core_type<tc>, window_params = [{transform_indices = @transform_0, window_bounds = array<i64: 1>}, {transform_indices = @transform_1, window_bounds = array<i64: 16, 32>}, {pipeline_mode = #tpu.pipeline_mode<synchronous>, transform_indices = @transform_2, window_bounds = array<i64: 4, 32>}, {pipeline_mode = #tpu.pipeline_mode<synchronous>, transform_indices = @transform_3, window_bounds = array<i64: 1, 4>}, {transform_indices = @transform_4, window_bounds = array<i64: 16, 4>}]} {
    %c0 = arith.constant 0 : index
    %c0_0 = arith.constant 0 : index
    %0 = vector.load %arg2[%c0, %c0_0] : memref<16x32xf32, #tpu.memory_space<vmem>>, vector<16x32xf32>
    %c0_1 = arith.constant 0 : index
    %c0_2 = arith.constant 0 : index
    %1 = vector.load %arg3[%c0_1, %c0_2] : memref<4x32xf32, #tpu.memory_space<vmem>>, vector<4x32xf32>
    %cst = arith.constant dense<0.000000e+00> : vector<16x4xf32>
    %2 = tpu.matmul %0, %1, %cst {dimension_numbers = #tpu.dot_dimension_numbers<[1], [1], [0], [0], [0, 0, 1, 0], [], []>} : vector<16x32xf32>, vector<4x32xf32>, vector<16x4xf32> -> vector<16x4xf32>
    %c0_3 = arith.constant 0 : index
    %c0_4 = arith.constant 0 : index
    %3 = vector.load %arg4[%c0_3, %c0_4] : memref<1x4xf32, #tpu.memory_space<vmem>>, vector<1x4xf32>
    %4 = vector.broadcast %3 : vector<1x4xf32> to vector<16x4xf32>
    %5 = arith.addf %2, %4 : vector<16x4xf32>
    %c0_5 = arith.constant 0 : index
    %c0_6 = arith.constant 0 : index
    %6 = vector.load %arg5[%c0_5, %c0_6] : memref<16x4xf32, #tpu.memory_space<vmem>>, vector<16x4xf32>
    tpu.vector_store %arg5[%c0_5, %c0_6], %5 {strides = array<i32>} : memref<16x4xf32, #tpu.memory_space<vmem>>, vector<16x4xf32>,
    return
  }
  func.func @transform_0(%arg0: i32) -> i32 {
    %c0_i32 = arith.constant 0 : i32
    %c0_i32_0 = arith.constant 0 : i32
    return %c0_i32 : i32
  }
  func.func @transform_1(%arg0: i32) -> (i32, i32) {
    %c0_i32 = arith.constant 0 : i32
    %c0_i32_0 = arith.constant 0 : i32
    return %arg0, %c0_i32 : i32, i32
  }
  func.func @transform_2(%arg0: i32) -> (i32, i32) {
    %c0_i32 = arith.constant 0 : i32
    %c0_i32_0 = arith.constant 0 : i32
    %c0_i32_1 = arith.constant 0 : i32
    return %c0_i32, %c0_i32_0 : i32, i32
  }
  func.func @transform_3(%arg0: i32) -> (i32, i32) {
    %c0_i32 = arith.constant 0 : i32
    %c0_i32_0 = arith.constant 0 : i32
    %c0_i32_1 = arith.constant 0 : i32
    return %c0_i32, %c0_i32_0 : i32, i32
  }
  func.func @transform_4(%arg0: i32) -> (i32, i32) {
    %c0_i32 = arith.constant 0 : i32
    %c0_i32_0 = arith.constant 0 : i32
    return %arg0, %c0_i32 : i32, i32
  }
}

</mosaic_0001>

<llo_original>
// kernel: tpu_custom_call.1
$region0: #{tpu_custom_call.1}
  #allocation0 [shape = 'u32[]', space=smem, size = 0x4, offset = 0x4, fixed_abs, tag = 'smem constant byte address 0x4 - core index']
  #allocation1 [shape = 'u32[72,128]{1,0:T(1,128)}', space=vmem, size = 0x9000, scoped, tag = 'internal scratch']
  #allocation2 [shape = 's32[1]{0:T(128)S(6)}', space=smem, size = 0x200, scoped, tag = 'scoped memory for tpu_custom_call.1']
  %s0 = inlined_call_operand.<no memory space> [shape: s32[1], index: 0, kind: input, shape index: {}]
  %s1 = inlined_call_operand.hbm [shape: f32[16,32], index: 1, kind: input, shape index: {}]
  %s2 = inlined_call_operand.hbm [shape: f32[4,32], index: 2, kind: input, shape index: {}]
  %s3 = inlined_call_operand.vmem [shape: f32[1,4], index: 3, kind: input, shape index: {}]
  %s4 = inlined_call_operand.vmem [shape: f32[16,4], index: 4, kind: output, shape index: {}]
  %s5 = sld [smem:[#allocation0]]
  $region34: #{tpu_custom_call.1} parent=0
    _
  %s7 = ssub.s32 1, %s5
  %s8 = scalar_select 0, %s7, %s5
  %9 = sst [smem:[#allocation2]] %s0
  $region1: #{tpu_custom_call.1} parent=0
    #allocation3 [shape = 'u8[8192]{0}', space=vmem, size = 0x2000, scoped, tag = 'input window, operand 1, single buffered']
    #allocation4 [shape = 's32[1]{0}', space=sflag, size = 0x4, scoped, tag = 'scoped memory for tpu_custom_call.1']
    #allocation5 [shape = 'u8[2048]{0}', space=vmem, size = 0x800, scoped, tag = 'input window, operand 2, single buffered']
    #allocation6 [shape = 's32[1]{0}', space=sflag, size = 0x4, scoped, tag = 'scoped memory for tpu_custom_call.1']
    %10 = vsyncpa [#allocation4], 0
    %11 = vsyncpa [#allocation6], 0
    // Predicated region
    $region2: #{tpu_custom_call.1} parent=1 // pred_check
      _
    $region3: #{tpu_custom_call.1} parent=1 // pred_check_branch
      %13 = sbr.rel (0) target = $region5
    $region4: #{tpu_custom_call.1} parent=1 // pred_region
      _
    $region5: #{tpu_custom_call.1} parent=1 // pred_fallthru
      _
    // Predicated region
    $region6: #{tpu_custom_call.1} parent=1 // pred_check
      _
    $region7: #{tpu_custom_call.1} parent=1 // pred_check_branch
      %15 = sbr.rel (0) target = $region9
    $region8: #{tpu_custom_call.1} parent=1 // pred_region
      %17 = vsyncadd [#allocation4], 0
      %s18 = sshll.u32 %s1, 4
      %s19 = int_to_ptr.hbm [resolvable:$true] %s18
      %s20 = sshll.u32 [#allocation3], 4
      %s21 = int_to_ptr.vmem [resolvable:$true] %s20
      %26 = dma.hbm_to_vmem [thread:$0]  %s19, 256, %s21, [#allocation4], 128, 128, 8
    $region9: #{tpu_custom_call.1} parent=1 // pred_fallthru
      _
    // Predicated region
    $region10: #{tpu_custom_call.1} parent=1 // pred_check
      _
    $region11: #{tpu_custom_call.1} parent=1 // pred_check_branch
      %28 = sbr.rel (0) target = $region13
    $region12: #{tpu_custom_call.1} parent=1 // pred_region
      %30 = vsyncadd [#allocation6], 0
      %s32 = sshll.u32 %s2, 4
      %s33 = int_to_ptr.hbm [resolvable:$true] %s32
      %s34 = sshll.u32 [#allocation5], 4
      %s35 = int_to_ptr.vmem [resolvable:$true] %s34
      %37 = dma.hbm_to_vmem [thread:$0]  %s33, 64, %s35, [#allocation6]
    $region13: #{tpu_custom_call.1} parent=1 // pred_fallthru
      _
    // Predicated region
    $region14: #{tpu_custom_call.1} parent=1 // pred_check
      _
    $region15: #{tpu_custom_call.1} parent=1 // pred_check_branch
      %39 = sbr.rel (0) target = $region17
    $region16: #{tpu_custom_call.1} parent=1 // pred_region
      _
    $region17: #{tpu_custom_call.1} parent=1 // pred_fallthru
      _
    // Predicated region
    $region18: #{tpu_custom_call.1} parent=1 // pred_check
      _
    $region19: #{tpu_custom_call.1} parent=1 // pred_check_branch
      %41 = sbr.rel (0) target = $region21
    $region20: #{tpu_custom_call.1} parent=1 // pred_region
      %43 = dma.done [#allocation4], 256
    $region21: #{tpu_custom_call.1} parent=1 // pred_fallthru
      _
    // Predicated region
    $region22: #{tpu_custom_call.1} parent=1 // pred_check
      _
    $region23: #{tpu_custom_call.1} parent=1 // pred_check_branch
      %45 = sbr.rel (0) target = $region25
    $region24: #{tpu_custom_call.1} parent=1 // pred_region
      %47 = dma.done [#allocation6], 64
    $region25: #{tpu_custom_call.1} parent=1 // pred_fallthru
      _
    %v48 = vld [vmem:[#allocation3] sm:$0xff]
    %v49 = vld [vmem:[#allocation3 + $0x8] sm:$0xff]
    %v50 = vld [vmem:[#allocation5] sm:$0xf]
    %v51 = vld [vmem:[%s3] sm:$0x1]
    %v53 = vperm.slane %v51, 0
    %vm55 = vcmask 261120
    %v57 = vsel %vm55, %v48, 0
    %v60 = vsel %vm55, %v49, 0
    %v63 = vsel %vm55, %v50, 0
    %65 = vmatpush.xpose.msra.mxu0 0.0
    %66 = vmatpush.xpose.msra.mxu0 0.0
    %67 = vmatpush.xpose.msra.mxu0 0.0
    %68 = vmatpush.xpose.msra.mxu0 0.0
    %69 = vmatpush.xpose.msra.mxu0 0.0
    %70 = vmatpush.xpose.msra.mxu0 0.0
    %71 = vmatpush.xpose.msra.mxu0 0.0
    %72 = vmatpush.xpose.msra.mxu0 0.0
    %73 = vmatpush.xpose.msra.mxu0 0.0
    %74 = vmatpush.xpose.msra.mxu0 0.0
    %75 = vmatpush.xpose.msra.mxu0 0.0
    %76 = vmatpush.xpose.msra.mxu0 0.0
    %77 = vmatpush.xpose.msra.mxu0 0.0
    %78 = vmatpush.xpose.msra.mxu0 0.0
    %79 = vmatpush.xpose.msra.mxu0 0.0
    %80 = vmatpush.xpose.msra.mxu0 %v63
    %81 = vmatmul.f32.gmra.mxu0 %v57
    %v82 = vpop.f32.mrf.mxu0
    %v83 = vadd.f32 %v53, %v82
    %84 = vmatmul.f32.gmra.mxu0 %v60
    %v85 = vpop.f32.mrf.mxu0
    %v86 = vadd.f32 %v53, %v85
    %87 = vdwg.mxu0
    %vm88 = vcmask 31744
    %89 = vst.msk [vmem:[%s4] sm:$0xff] %vm88, %v83
    %90 = vst.msk [vmem:[%s4 + $0x8] sm:$0xff] %vm88, %v86
    // Predicated region
    $region26: #{tpu_custom_call.1} parent=1 // pred_check
      _
    $region27: #{tpu_custom_call.1} parent=1 // pred_check_branch
      %92 = sbr.rel (0) target = $region29
    $region28: #{tpu_custom_call.1} parent=1 // pred_region
      _
    $region29: #{tpu_custom_call.1} parent=1 // pred_fallthru
      _
    // Predicated region
    $region30: #{tpu_custom_call.1} parent=1 // pred_check
      _
    $region31: #{tpu_custom_call.1} parent=1 // pred_check_branch
      %94 = sbr.rel (0) target = $region33
    $region32: #{tpu_custom_call.1} parent=1 // pred_region
      _
    $region33: #{tpu_custom_call.1} parent=1 // pred_fallthru
      _
    %95 = vsyncpa [#allocation4], 1
    %96 = vsyncpa [#allocation6], 1

</llo_original>
